<compile_context>
chip_gen: v7x
topology: tpu7x:2x2x1
jax: 0.10.0
libtpu: 0.0.40
codegen_flags: <defaults>
</compile_context>

<pallas_src>
import functools

import jax
import jax.numpy as jnp
from jax.experimental import pallas as pl
from jax.experimental.pallas import tpu as pltpu


def _round_up(x, m):
    return ((x + m - 1) // m) * m


def _vmem_capacity_bytes():
    """Per-TensorCore VMEM capacity; conservative 64 MiB (v7x) fallback."""
    try:
        info = pltpu.get_tpu_info()
        return int(getattr(info, "vmem_capacity_bytes", 64 << 20))
    except Exception:  # pragma: no cover - query unavailable
        return 64 << 20


def _patch_embed_kernel(p_ref, w_ref, b_ref, o_ref):
    # p_ref: (tm, Kp)   patch rows (bf16 or f32)
    # w_ref: (Kp, te)   flattened conv-weight tile (bf16 or f32)
    # b_ref: (1, te)    bias tile (f32)
    # o_ref: (tm, te)
    acc = jnp.dot(p_ref[...], w_ref[...], preferred_element_type=jnp.float32)
    # f32 epilogue (bias add + cast): keeps VPU work in f32 (required on v5e,
    # harmless on v6e/v7x).
    o_ref[...] = (acc + b_ref[...]).astype(o_ref.dtype)


def patch_embed_forward(x, weight, bias, patch_size, use_bf16_mxu=True,
                        channels_last=False):
    """x: (N, C, H, W); weight: (E, C, p, p); bias: (E,).

    Returns (N, E, H//p, W//p) (or (N, H//p, W//p, E) if channels_last=True),
    matching nn.Conv2d(stride=p, kernel=p, pad=0).

    With use_bf16_mxu=True (default), f32 inputs are cast to bf16 for the MXU
    while accumulation and the bias epilogue stay in f32 — the standard ViT
    numerics; expect ~bf16-level agreement with an all-f32 reference.
    """
    N, C, H, W = x.shape
    E = weight.shape[0]
    p = patch_size
    assert H % p == 0 and W % p == 0
    Hp, Wp = H // p, W // p

    M = N * Hp * Wp
    K = C * p * p

    # MXU operand dtype: bf16 by default for f32 activations (all generations
    # have bf16-native MXUs; v7x has no native f32 path at all).
    if use_bf16_mxu and x.dtype == jnp.float32:
        mxu_dtype = jnp.bfloat16
    else:
        mxu_dtype = x.dtype
    in_bytes = jnp.dtype(mxu_dtype).itemsize
    out_dtype = x.dtype
    out_bytes = jnp.dtype(out_dtype).itemsize

    # --- glue: cast FIRST (halves transpose/pad traffic), then extract
    # non-overlapping patches with plain reshapes/transpose. ---
    # (N, C, Hp, p, Wp, p) -> (N, Hp, Wp, C, p, p) -> (N*Hp*Wp, C*p*p)
    xc = x.astype(mxu_dtype)
    patches = xc.reshape(N, C, Hp, p, Wp, p)
    patches = patches.transpose(0, 2, 4, 1, 3, 5)
    patches = patches.reshape(M, K)

    # flattened weight: (E, C*p*p) -> (C*p*p, E); bias as an f32 row.
    w_flat = weight.astype(mxu_dtype).reshape(E, K).T
    b_row = bias.reshape(1, E).astype(jnp.float32)

    # --- lane-align K and E (multiples of 128): full-width MXU passes and
    # unmasked (lane-dense) output stores. ---
    K_pad = _round_up(K, 128)
    E_pad = _round_up(E, 128)

    # Generation-aware VMEM budget (~40 MiB on 64-MiB v7x, ~80 MiB on 128-MiB
    # v5e/v6e).  Budget is per TensorCore.
    vmem_cap = _vmem_capacity_bytes()
    budget = (vmem_cap * 5) // 8

    # E tile: keep the whole flattened weight VMEM-resident whenever it fits
    # (always true for real PatchEmbed shapes) so it is DMA'd exactly once;
    # otherwise fall back to 256-wide tiles (full 256x256 MXU passes).
    w_bytes = K_pad * E_pad * in_bytes
    if w_bytes <= min(budget // 3, 16 << 20):
        te = E_pad
    elif E_pad % 256 == 0:
        te = 256
    else:
        te = 128

    # --- largest row tile (<=512, multiple of 8) whose double-buffered working
    # set fits under the per-generation budget. ---
    tm = 512
    while tm > 8:
        need = (2 * tm * K_pad * in_bytes        # LHS tile (double-buffered)
                + 2 * tm * te * out_bytes        # output tile
                + 2 * K_pad * te * in_bytes      # weight tile
                + 2 * te * 4)                    # bias tile
        if need <= budget:
            break
        tm //= 2
    tm = min(tm, _round_up(M, 8))                # don't over-pad tiny inputs
    # Guarantee >= 2 row stripes when M allows it so both v7x TensorCores get
    # work on the megacore-sharded ("parallel") M axis.
    if M > 8:
        tm = min(tm, max(8, _round_up((M + 1) // 2, 8)))
    M_pad = _round_up(M, tm)

    if M_pad != M or K_pad != K:
        patches = jnp.pad(patches, ((0, M_pad - M), (0, K_pad - K)))
    if K_pad != K or E_pad != E:
        w_flat = jnp.pad(w_flat, ((0, K_pad - K), (0, E_pad - E)))
    if E_pad != E:
        b_row = jnp.pad(b_row, ((0, 0), (0, E_pad - E)))

    grid = (M_pad // tm, E_pad // te)

    need_bytes = (2 * tm * K_pad * in_bytes + 2 * tm * te * out_bytes
                  + 2 * K_pad * te * in_bytes + 2 * te * 4)
    # Keep headroom for Mosaic internal scratch: cap at 3/4 of physical VMEM
    # (48 MiB on v7x, 96 MiB on v5e/v6e).
    vmem_limit = int(min(max(2 * need_bytes + (8 << 20), 32 << 20),
                         (vmem_cap * 3) // 4))

    cost = pl.CostEstimate(
        flops=2 * M * K * E,
        transcendentals=0,
        bytes_accessed=(M * K + K * E) * in_bytes + E * 4 + M * E * out_bytes,
    )

    out_flat = pl.pallas_call(
        _patch_embed_kernel,
        out_shape=jax.ShapeDtypeStruct((M_pad, E_pad), out_dtype),
        grid_spec=pltpu.PrefetchScalarGridSpec(
            num_scalar_prefetch=0,
            grid=grid,
            in_specs=[
                # LHS block index is constant along the fast E axis -> fetched
                # once per row stripe.
                pl.BlockSpec((tm, K_pad), lambda i, j: (i, 0)),
                # Weight/bias block indices are constant along the M axis ->
                # with te == E_pad (the common case) they are DMA'd exactly
                # once for the whole call.
                pl.BlockSpec((K_pad, te), lambda i, j: (0, j)),
                pl.BlockSpec((1, te), lambda i, j: (0, j)),
            ],
            out_specs=pl.BlockSpec((tm, te), lambda i, j: (i, j)),
        ),
        compiler_params=pltpu.CompilerParams(
            dimension_semantics=("parallel", "parallel"),
            vmem_limit_bytes=vmem_limit,
            # Let XLA fuse the patch rearrangement (cast/transpose/pad chain)
            # into the pallas_call operand instead of a separate HBM pass.
            allow_input_fusion=[True, False, False],
        ),
        cost_estimate=cost,
    )(patches, w_flat, b_row)

    # --- glue: drop padding, back to the requested output layout ---
    out = out_flat
    if M_pad != M or E_pad != E:
        out = out[:M, :E]
    out = out.reshape(N, Hp, Wp, E)
    if not channels_last:
        out = out.transpose(0, 3, 1, 2)          # conv NCHW output layout
    return out


if __name__ == "__main__":
    # Small, module-consistent shapes.
    N, C, H, W = 2, 4, 16, 16
    patch_size = 4
    embed_dim = 32

    key = jax.random.PRNGKey(0)
    kx, kw, kb = jax.random.split(key, 3)

    x = jax.random.normal(kx, (N, C, H, W), dtype=jnp.float32)
    # Deterministic synthetic params (Conv2d weight (E, C, p, p), bias (E,)).
    fan_in = C * patch_size * patch_size
    bound = 1.0 / jnp.sqrt(fan_in)
    weight = jax.random.uniform(
        kw, (embed_dim, C, patch_size, patch_size),
        minval=-bound, maxval=bound, dtype=jnp.float32)
    bias = jax.random.uniform(
        kb, (embed_dim,), minval=-bound, maxval=bound, dtype=jnp.float32)

    fwd = jax.jit(functools.partial(patch_embed_forward, patch_size=patch_size))
    out = fwd(x, weight, bias)
    out = jax.block_until_ready(out)

    # Reference: XLA conv with the same bf16-rounded operands and f32
    # accumulation (kernel uses bf16 MXU inputs + f32 accumulate by default).
    x_ref = x.astype(jnp.bfloat16).astype(jnp.float32)
    w_ref = weight.astype(jnp.bfloat16).astype(jnp.float32)
    ref = jax.lax.conv_general_dilated(
        x_ref, w_ref, window_strides=(patch_size, patch_size), padding="VALID",
        dimension_numbers=("NCHW", "OIHW", "NCHW"))
    ref = ref + bias.reshape(1, -1, 1, 1)

    assert out.shape == (N, embed_dim, H // patch_size, W // patch_size)
    assert jnp.allclose(out, ref, atol=1e-4, rtol=1e-4)
    print("KERNEL_OK")
</pallas_src>

<mosaic_0001>
module attributes {stable_mosaic.version = 11 : i64} {
  func.func @_patch_embed_kernel(%arg0: i32, %arg1: i32, %arg2: memref<16x128xbf16, #tpu.memory_space<vmem>>, %arg3: memref<128x128xbf16, #tpu.memory_space<vmem>>, %arg4: memref<1x128xf32, #tpu.memory_space<vmem>>, %arg5: memref<16x128xf32, #tpu.memory_space<vmem>>) attributes {dimension_semantics = [#tpu.dimension_semantics<parallel>, #tpu.dimension_semantics<parallel>], iteration_bounds = array<i64: 2, 1>, scalar_prefetch = 0 : i64, scratch_operands = 0 : i64, tpu.core_type = #tpu.core_type<tc>, window_params = [{transform_indices = @transform_0, window_bounds = array<i64: 16, 128>}, {transform_indices = @transform_1, window_bounds = array<i64: 128, 128>}, {transform_indices = @transform_2, window_bounds = array<i64: 1, 128>}, {transform_indices = @transform_3, window_bounds = array<i64: 16, 128>}]} {
    %c0 = arith.constant 0 : index
    %c0_0 = arith.constant 0 : index
    %0 = vector.load %arg2[%c0, %c0_0] : memref<16x128xbf16, #tpu.memory_space<vmem>>, vector<16x128xbf16>
    %c0_1 = arith.constant 0 : index
    %c0_2 = arith.constant 0 : index
    %1 = vector.load %arg3[%c0_1, %c0_2] : memref<128x128xbf16, #tpu.memory_space<vmem>>, vector<128x128xbf16>
    %cst = arith.constant dense<0.000000e+00> : vector<16x128xf32>
    %2 = tpu.matmul %0, %1, %cst {dimension_numbers = #tpu.dot_dimension_numbers<[1], [0], [0], [1], [0, 0, 1, 1], [], []>} : vector<16x128xbf16>, vector<128x128xbf16>, vector<16x128xf32> -> vector<16x128xf32>
    %c0_3 = arith.constant 0 : index
    %c0_4 = arith.constant 0 : index
    %3 = vector.load %arg4[%c0_3, %c0_4] : memref<1x128xf32, #tpu.memory_space<vmem>>, vector<1x128xf32>
    %4 = vector.broadcast %3 : vector<1x128xf32> to vector<16x128xf32>
    %5 = arith.addf %2, %4 : vector<16x128xf32>
    %c0_5 = arith.constant 0 : index
    %c0_6 = arith.constant 0 : index
    %6 = vector.load %arg5[%c0_5, %c0_6] : memref<16x128xf32, #tpu.memory_space<vmem>>, vector<16x128xf32>
    tpu.vector_store %arg5[%c0_5, %c0_6], %5 {strides = array<i32>} : memref<16x128xf32, #tpu.memory_space<vmem>>, vector<16x128xf32>,
    return
  }
  func.func @transform_0(%arg0: i32, %arg1: i32) -> (i32, i32) {
    %c0_i32 = arith.constant 0 : i32
    %c0_i32_0 = arith.constant 0 : i32
    return %arg0, %c0_i32 : i32, i32
  }
  func.func @transform_1(%arg0: i32, %arg1: i32) -> (i32, i32) {
    %c0_i32 = arith.constant 0 : i32
    %c0_i32_0 = arith.constant 0 : i32
    return %c0_i32, %arg1 : i32, i32
  }
  func.func @transform_2(%arg0: i32, %arg1: i32) -> (i32, i32) {
    %c0_i32 = arith.constant 0 : i32
    %c0_i32_0 = arith.constant 0 : i32
    return %c0_i32, %arg1 : i32, i32
  }
  func.func @transform_3(%arg0: i32, %arg1: i32) -> (i32, i32) {
    %c0_i32 = arith.constant 0 : i32
    return %arg0, %arg1 : i32, i32
  }
}

</mosaic_0001>

<llo_original>
// kernel: patch_embed_forward.2
$region0: #{patch_embed_forward.2}
  #allocation0 [shape = 'u32[]', space=smem, size = 0x4, offset = 0x4, fixed_abs, tag = 'smem constant byte address 0x4 - core index']
  #allocation1 [shape = 'u32[144,128]{1,0:T(1,128)}', space=vmem, size = 0x12000, scoped, tag = 'internal scratch']
  #allocation2 [shape = 'u32[2048]{0}', space=vmem, size = 0x2000, scoped, tag = 'scoped memory for patch_embed_forward.2']
  #allocation3 [shape = 'u32[2048]{0}', space=vmem, size = 0x2000, scoped, tag = 'scoped memory for patch_embed_forward.2']
  #allocation4 [shape = 'u32[2048]{0}', space=vmem, size = 0x2000, scoped, tag = 'scoped memory for patch_embed_forward.2']
  #allocation5 [shape = 'u32[2048]{0}', space=vmem, size = 0x2000, scoped, tag = 'scoped memory for patch_embed_forward.2']
  #allocation6 [shape = 'u32[2048]{0}', space=vmem, size = 0x2000, scoped, tag = 'scoped memory for patch_embed_forward.2']
  %s0 = inlined_call_operand.vmem [shape: bf16[128,128], index: 0, kind: input, shape index: {}]
  %s1 = inlined_call_operand.vmem [shape: f32[1,128], index: 1, kind: input, shape index: {}]
  %s2 = inlined_call_operand.vmem [shape: bf16[32,64], index: 2, kind: input, shape index: {}]
  %s3 = inlined_call_operand.<no memory space> [shape: bf16[], index: 3, kind: input, shape index: {}]
  %s4 = inlined_call_operand.hbm [shape: f32[32,128], index: 4, kind: output, shape index: {}]
  %s5 = sld [smem:[#allocation0]]
  $region45: #{patch_embed_forward.2} parent=0
    _
  %s7 = ssub.s32 1, %s5
  %s8 = scalar_select 0, %s7, %s5
  %v9 = vstv %s3
  %v10 = vunpack.i.l.bf16 %v9
  %v12 = vunpack.i.h.bf16 %v9
  $region1: #{patch_embed_forward.2} parent=0
    #allocation7 [shape = 'u8[16384]{0}', space=vmem, size = 0x4000, scoped, tag = 'output window, operand 0']
    #allocation8 [shape = 's32[2]{0}', space=sflag, size = 0x8, scoped, tag = 'scoped memory for patch_embed_forward.2']
    %14 = vsyncpa [#allocation8], 0
    %s15 = scalar_lea.sflag [#allocation8], 1
    %16 = vsyncpa %s15, 0
    loop: start=0, step=1, limit=4
    $region2: #{patch_embed_forward.2} parent=1 // loop_pre_header
      _
    $region3: #{patch_embed_forward.2} parent=1 // loop_header
      %s18 = sphi 0, %s22
      %p19 = scmp.ge.s32.totalorder %s18, 4
      %s25 = sphi 0, %s37
      %s26 = sphi 0, %s33
      %s27 = sphi 0, %s25
      %s28 = sphi 0, %s26
      %s29 = sphi 0, %s27
      %s30 = sphi 0, %s28
      %s40 = sphi 0, %s42
      %s43 = sphi 0, %s40
      %s44 = sphi 0, %s43
      %s60 = sphi 0, %s44
      %s66 = sphi 0, %s68
      %s69 = sphi 0, %s66
      %s70 = sphi 0, %s69
      %s86 = sphi 0, %s70
      %s92 = sphi 0, %s94
      %s95 = sphi 0, %s92
      %s96 = sphi 0, %s95
      %s112 = sphi 0, %s96
      %s120 = sphi 0, %s122
      %s123 = sphi 0, %s120
      %s124 = sphi 0, %s123
      %s140 = sphi 0, %s124
    $region4: #{patch_embed_forward.2} parent=1 // loop_header_branch
      %21 = sbr.rel (%p19) target = $region8
    $region5: #{patch_embed_forward.2} parent=1 // loop_body
      %s23 = ssub.s32 %s18, 1
      %s24 = ssub.s32 %s18, 2
      %s31 = sadd.s32 1, %s26
      %p32 = scmp.ge.s32.totalorder %s31, 1
      %s33 = scalar_select %p32, 0, %s31
      %s34 = sadd.s32 1, %s25
      %s35 = scalar_select %p32, %s34, %s25
      %p36 = scmp.ge.s32.totalorder %s35, 2
      %s37 = scalar_select %p36, 0, %s35
      %s38 = ssub.s32 %s25, %s37
      %p39 = scmp.eq.s32.totalorder %s38, 0
      %s41 = sadd.s32 %s40, 1
      %s42 = scalar_select %p39, %s40, %s41
      %p45 = pneg %p39
      %p46 = scmp.eq.s32.totalorder %s18, 1
      %p47 = por %p45, %p46
      %p48 = scmp.ne.s32.totalorder %s40, %s43
      %p49 = scmp.eq.s32.totalorder %s18, 0
      %p50 = por %p48, %p49
      %p51 = scmp.ne.s32.totalorder %s40, %s43
      %p52 = scmp.eq.s32.totalorder %s23, 1
      %p53 = por %p51, %p52
      %p54 = scmp.ne.s32.totalorder %s43, %s44
      %p55 = scmp.eq.s32.totalorder %s23, 0
      %p56 = por %p54, %p55
      %p57 = scmp.ne.s32.totalorder %s43, %s44
      %p58 = scmp.eq.s32.totalorder %s24, 1
      %p59 = por %p57, %p58
      %p61 = scmp.ne.s32.totalorder %s44, %s60
      %p62 = scmp.eq.s32.totalorder %s24, 0
      %p63 = por %p61, %p62
      %s64 = ssub.s32 %s26, %s33
      %p65 = scmp.eq.s32.totalorder %s64, 0
      %s67 = sadd.s32 %s66, 1
      %s68 = scalar_select %p65, %s66, %s67
      %p71 = pneg %p65
      %p72 = scmp.eq.s32.totalorder %s18, 1
      %p73 = por %p71, %p72
      %p74 = scmp.ne.s32.totalorder %s66, %s69
      %p75 = scmp.eq.s32.totalorder %s18, 0
      %p76 = por %p74, %p75
      %p77 = scmp.ne.s32.totalorder %s66, %s69
      %p78 = scmp.eq.s32.totalorder %s23, 1
      %p79 = por %p77, %p78
      %p80 = scmp.ne.s32.totalorder %s69, %s70
      %p81 = scmp.eq.s32.totalorder %s23, 0
      %p82 = por %p80, %p81
      %p83 = scmp.ne.s32.totalorder %s69, %s70
      %p84 = scmp.eq.s32.totalorder %s24, 1
      %p85 = por %p83, %p84
      %p87 = scmp.ne.s32.totalorder %s70, %s86
      %p88 = scmp.eq.s32.totalorder %s24, 0
      %p89 = por %p87, %p88
      %s90 = ssub.s32 %s26, %s33
      %p91 = scmp.eq.s32.totalorder %s90, 0
      %s93 = sadd.s32 %s92, 1
      %s94 = scalar_select %p91, %s92, %s93
      %p97 = pneg %p91
      %p98 = scmp.eq.s32.totalorder %s18, 1
      %p99 = por %p97, %p98
      %p100 = scmp.ne.s32.totalorder %s92, %s95
      %p101 = scmp.eq.s32.totalorder %s18, 0
      %p102 = por %p100, %p101
      %p103 = scmp.ne.s32.totalorder %s92, %s95
      %p104 = scmp.eq.s32.totalorder %s23, 1
      %p105 = por %p103, %p104
      %p106 = scmp.ne.s32.totalorder %s95, %s96
      %p107 = scmp.eq.s32.totalorder %s23, 0
      %p108 = por %p106, %p107
      %p109 = scmp.ne.s32.totalorder %s95, %s96
      %p110 = scmp.eq.s32.totalorder %s24, 1
      %p111 = por %p109, %p110
      %p113 = scmp.ne.s32.totalorder %s96, %s112
      %p114 = scmp.eq.s32.totalorder %s24, 0
      %p115 = por %p113, %p114
      %s116 = ssub.s32 %s25, %s37
      %s117 = ssub.s32 %s26, %s33
      %s118 = sor.u32 %s116, %s117
      %p119 = scmp.eq.s32.totalorder %s118, 0
      %s121 = sadd.s32 %s120, 1
      %s122 = scalar_select %p119, %s120, %s121
      %p125 = pneg %p119
      %p126 = scmp.eq.s32.totalorder %s18, 1
      %p127 = por %p125, %p126
      %p128 = scmp.ne.s32.totalorder %s120, %s123
      %p129 = scmp.eq.s32.totalorder %s18, 0
      %p130 = por %p128, %p129
      %p131 = scmp.ne.s32.totalorder %s120, %s123
      %p132 = scmp.eq.s32.totalorder %s23, 1
      %p133 = por %p131, %p132
      %p134 = scmp.ne.s32.totalorder %s123, %s124
      %p135 = scmp.eq.s32.totalorder %s23, 0
      %p136 = por %p134, %p135
      %p137 = scmp.ne.s32.totalorder %s123, %s124
      %p138 = scmp.eq.s32.totalorder %s24, 1
      %p139 = por %p137, %p138
      %p141 = scmp.ne.s32.totalorder %s124, %s140
      %p142 = scmp.eq.s32.totalorder %s24, 0
      %p143 = por %p141, %p142
      %p144 = scmp.le.s32.totalorder 1, %s18
      %p145 = scmp.lt.s32.totalorder %s18, 3
      %p146 = pnand %p144, %p145
      %p147 = pneg %p146
      // Predicated region
      $region9: #{patch_embed_forward.2} parent=5 // pred_check
        _
      $region10: #{patch_embed_forward.2} parent=5 // pred_check_branch
        %149 = sbr.rel (%p146) target = $region12
      $region11: #{patch_embed_forward.2} parent=5 // pred_region
        %s150 = ssub.s32 %s18, 1
        // Predicated region
        $region13: #{patch_embed_forward.2} parent=11 // pred_check
          %p151 = pneg %p82
        $region14: #{patch_embed_forward.2} parent=11 // pred_check_branch
          %153 = sbr.rel (%p151) target = $region16
        $region15: #{patch_embed_forward.2} parent=11 // pred_region
          %p154 = scmp.lt.s32.totalorder %s28, 0
          %s155 = scalar_select %p154, %s28, 0
          %s156 = smul.addr %s155, 4
          %s157 = scalar_lea.vmem %s0, %s156
        $region16: #{patch_embed_forward.2} parent=11 // pred_fallthru
          _
        // Predicated region
        $region17: #{patch_embed_forward.2} parent=11 // pred_check
          %p158 = pneg %p108
        $region18: #{patch_embed_forward.2} parent=11 // pred_check_branch
          %160 = sbr.rel (%p158) target = $region20
        $region19: #{patch_embed_forward.2} parent=11 // pred_region
          %p161 = scmp.lt.s32.totalorder %s28, 0
          %s162 = scalar_select %p161, %s28, 0
          %s163 = scalar_lea.vmem %s1, %s162
        $region20: #{patch_embed_forward.2} parent=11 // pred_fallthru
          _
      $region12: #{patch_embed_forward.2} parent=5 // pred_fallthru
        _
      %p164 = scmp.lt.s32.totalorder %s18, 2
      // Predicated region
      $region21: #{patch_embed_forward.2} parent=5 // pred_check
        %p165 = pneg %p164
      $region22: #{patch_embed_forward.2} parent=5 // pred_check_branch
        %167 = sbr.rel (%p165) target = $region24
      $region23: #{patch_embed_forward.2} parent=5 // pred_region
        // Predicated region
        $region25: #{patch_embed_forward.2} parent=23 // pred_check
          %p168 = pneg %p50
        $region26: #{patch_embed_forward.2} parent=23 // pred_check_branch
          %170 = sbr.rel (%p168) target = $region28
        $region27: #{patch_embed_forward.2} parent=23 // pred_region
          %s171 = smul.u32 2, %s25
          %p172 = scmp.lt.s32.totalorder %s171, 3
          %s173 = scalar_select %p172, %s171, 3
          %s174 = smul.addr %s173, 4
          %s175 = scalar_lea.vmem %s2, %s174
          %s176 = smul.u32 2, %s25
        $region28: #{patch_embed_forward.2} parent=23 // pred_fallthru
          _
      $region24: #{patch_embed_forward.2} parent=5 // pred_fallthru
        _
      %p177 = scmp.le.s32.totalorder 1, %s18
      %p178 = scmp.lt.s32.totalorder %s18, 3
      %p179 = pnand %p177, %p178
      %p180 = pneg %p179
      // Predicated region
      $region29: #{patch_embed_forward.2} parent=5 // pred_check
        _
      $region30: #{patch_embed_forward.2} parent=5 // pred_check_branch
        %182 = sbr.rel (%p179) target = $region32
      $region31: #{patch_embed_forward.2} parent=5 // pred_region
        #allocation9 [shape = 'u8[4096]{0}', space=vmem, size = 0x1000, dematerialized = true, scoped, tag = 'FusionAdapter Buffer %fusion.1 = bf16[32,128]{1,0:T(8,128)(2,1)} fusion(%param_2.1, %param_3), kind=kLoop, calls=%fused_computation.2.clone, metadata={op_name="jit(patch_embed_forward)/jit(_pad)/pad" stack_frame_id=13}']
        %s183 = ssub.s32 %s18, 1
        %s184 = smul.u32 2, %s27
        %p185 = scmp.lt.s32.totalorder %s184, 3
        %s186 = scalar_select %p185, %s184, 3
        %s187 = smul.addr %s186, 4
        %s188 = scalar_lea.vmem %s2, %s187
        %p189 = pneg %p56
        %p190 = pneg %p53
        %p191 = scmp.lt.s32.totalorder %s28, 0
        %s192 = scalar_select %p191, %s28, 0
        %s193 = smul.addr %s192, 4
        %s194 = scalar_lea.vmem %s0, %s193
        %p195 = pneg %p82
        %p196 = pneg %p79
        %p197 = scmp.lt.s32.totalorder %s28, 0
        %s198 = scalar_select %p197, %s28, 0
        %s199 = scalar_lea.vmem %s1, %s198
        %p200 = pneg %p108
        %p201 = pneg %p105
        %p202 = pneg %p136
        %p203 = pneg %p133
        %s204 = sand.u32 %s123, 1
        %s205 = scalar_lea.sflag [#allocation8], %s204
        %s206 = sand.u32 %s123, 1
        %s207 = smul.addr %s206, 16
        %s208 = scalar_lea.vmem [#allocation7], %s207
        %s209 = smul.u32 2, %s27
        %p210 = scmp.lt.s32.totalorder %s209, 3
        %s211 = scalar_select %p210, %s209, 3
        %s212 = smul.addr %s211, 4
        %s213 = scalar_lea.vmem %s2, %s212
        %s214 = smul.u32 2, %s27
        %p215 = scmp.lt.s32.totalorder %s28, 0
        %s216 = scalar_select %p215, %s28, 0
        %s217 = smul.addr %s216, 4
        %s218 = scalar_lea.vmem %s0, %s217
        %p219 = scmp.lt.s32.totalorder %s28, 0
        %s220 = scalar_select %p219, %s28, 0
        %s221 = scalar_lea.vmem %s1, %s220
        %s222 = smul.u32 2, %s27
        %s224 = sor.u32 255, 127
        %s225 = sand.u32 %s224, 85
        %s226 = sshrl.u32 %s225, 1
        %s227 = sor.u32 %s225, %s226
        %s228 = sand.u32 51, %s227
        %s229 = sshrl.u32 %s228, 2
        %s230 = sor.u32 %s228, %s229
        %s231 = sand.u32 15, %s230
        %v232 = vld [vmem:[%s213] sm:%s231]
        %v233 = vunpack.c.l.bf16 %v232
        %v234 = vunpack.c.h.bf16 %v232
        %v235 = vlaneseq
        %v236 = vand.u32 %v235, 127
        %vm238 = vcmp.lt.s32.totalorder %v236, 64
        %v239 = vsel %vm238, %v233, %v10
        %v240 = vpack.c.bf16 0.0, %v239
        %242 = vst [vmem:[#allocation9] sm:$0xf] %v240
        %s243 = scalar_lea.vmem %s213, 4
        %s245 = sor.u32 255, 127
        %s246 = sand.u32 %s245, 85
        %s247 = sshrl.u32 %s246, 1
        %s248 = sor.u32 %s246, %s247
        %s249 = sand.u32 51, %s248
        %s250 = sshrl.u32 %s249, 2
        %s251 = sor.u32 %s249, %s250
        %s252 = sand.u32 15, %s251
        %v253 = vld [vmem:[%s243] sm:%s252]
        %v254 = vunpack.c.l.bf16 %v253
        %v255 = vunpack.c.h.bf16 %v253
        %v256 = vlaneseq
        %v257 = vand.u32 %v256, 127
        %vm259 = vcmp.lt.s32.totalorder %v257, 64
        %v260 = vsel %vm259, %v254, %v10
        %s261 = scalar_lea.vmem [#allocation9], 4
        %v262 = vpack.c.bf16 0.0, %v260
        %264 = vst [vmem:[%s261] sm:$0xf] %v262
        %v266 = vld [vmem:[#allocation9] sm:$0xf]
        %v267 = vld [vmem:[#allocation9 + $0x4] sm:$0xf]
        %v268 = vld [vmem:[%s218] sm:$0xf]
        %v269 = vld [vmem:[%s218 + $0x4] sm:$0xf]
        %v270 = vld [vmem:[%s218 + $0x8] sm:$0xf]
        %v271 = vld [vmem:[%s218 + $0xc] sm:$0xf]
        %v272 = vld [vmem:[%s218 + $0x10] sm:$0xf]
        %v273 = vld [vmem:[%s218 + $0x14] sm:$0xf]
        %v274 = vld [vmem:[%s218 + $0x18] sm:$0xf]
        %v275 = vld [vmem:[%s218 + $0x1c] sm:$0xf]
        %v276 = vld [vmem:[%s218 + $0x20] sm:$0xf]
        %v277 = vld [vmem:[%s218 + $0x24] sm:$0xf]
        %v278 = vld [vmem:[%s218 + $0x28] sm:$0xf]
        %v279 = vld [vmem:[%s218 + $0x2c] sm:$0xf]
        %v280 = vld [vmem:[%s218 + $0x30] sm:$0xf]
        %v281 = vld [vmem:[%s218 + $0x34] sm:$0xf]
        %v282 = vld [vmem:[%s218 + $0x38] sm:$0xf]
        %v283 = vld [vmem:[%s218 + $0x3c] sm:$0xf]
        %v284 = vld [vmem:[%s221] sm:$0x1]
        %v286 = vlaneseq
        %v287 = vshrl.u32 %v286, 7
        %v288 = vsub.s32 0, %v287
        %v289 = vrot.slane %v284, %v288
        %v293 = vunpack.c.l.b16 %v266
        %v294 = vunpack.c.l.b16 %v267
        %v295 = vpack.c.b16 %v294, %v293
        %v313 = vunpack.c.l.b16 %v268
        %v314 = vunpack.c.l.b16 %v269
        %v315 = vunpack.c.l.b16 %v270
        %v316 = vunpack.c.l.b16 %v271
        %v317 = vunpack.c.l.b16 %v272
        %v318 = vunpack.c.l.b16 %v273
        %v319 = vunpack.c.l.b16 %v274
        %v320 = vunpack.c.l.b16 %v275
        %v321 = vunpack.c.l.b16 %v276
        %v322 = vunpack.c.l.b16 %v277
        %v323 = vunpack.c.l.b16 %v278
        %v324 = vunpack.c.l.b16 %v279
        %v325 = vunpack.c.l.b16 %v280
        %v326 = vunpack.c.l.b16 %v281
        %v327 = vunpack.c.l.b16 %v282
        %v328 = vunpack.c.l.b16 %v283
        %v329 = vpack.c.b16 %v314, %v313
        %v330 = vpack.c.b16 %v316, %v315
        %v331 = vpack.c.b16 %v318, %v317
        %v332 = vpack.c.b16 %v320, %v319
        %v333 = vpack.c.b16 %v322, %v321
        %v334 = vpack.c.b16 %v324, %v323
        %v335 = vpack.c.b16 %v326, %v325
        %v336 = vpack.c.b16 %v328, %v327
        %345 = vmatprep.subr.bf16.mxu0 0
        %346 = vmatpush1.bf16.msra.mxu0 %v329
        %347 = vmatprep.subr.bf16.mxu0 0
        %348 = vmatpush1.bf16.msra.mxu0 %v330
        %349 = vmatprep.subr.bf16.mxu0 0
        %350 = vmatpush1.bf16.msra.mxu0 %v331
        %351 = vmatprep.subr.bf16.mxu0 0
        %352 = vmatpush1.bf16.msra.mxu0 %v332
        %353 = vmatprep.subr.bf16.mxu0 0
        %354 = vmatpush1.bf16.msra.mxu0 %v333
        %355 = vmatprep.subr.bf16.mxu0 0
        %356 = vmatpush1.bf16.msra.mxu0 %v334
        %357 = vmatprep.subr.bf16.mxu0 0
        %358 = vmatpush1.bf16.msra.mxu0 %v335
        %359 = vmatprep.subr.bf16.mxu0 0
        %360 = vmatpush1.bf16.msra.mxu0 %v336
        %361 = vmatprep.subr.bf16.mxu0 0
        %362 = vmatpush1.bf16.msra.mxu0 0
        %363 = vmatprep.subr.bf16.mxu0 0
        %364 = vmatpush1.bf16.msra.mxu0 0
        %365 = vmatprep.subr.bf16.mxu0 0
        %366 = vmatpush1.bf16.msra.mxu0 0
        %367 = vmatprep.subr.bf16.mxu0 0
        %368 = vmatpush1.bf16.msra.mxu0 0
        %369 = vmatprep.subr.bf16.mxu0 0
        %370 = vmatpush1.bf16.msra.mxu0 0
        %371 = vmatprep.subr.bf16.mxu0 0
        %372 = vmatpush1.bf16.msra.mxu0 0
        %373 = vmatprep.subr.bf16.mxu0 0
        %374 = vmatpush1.bf16.msra.mxu0 0
        %375 = vmatprep.subr.bf16.mxu0 0
        %376 = vmatpush1.bf16.msra.mxu0 0
        %377 = vmatprep.mubr.bf16.mxu0 0
        %378 = vmatmul.mubr.bf16.gmra.mrb[0].mxu0 %v295
        %v379 = vpop.f32.mrb[0].mxu0
        %v380 = vadd.f32 %v289, %v379
        %v381 = vpop.f32.mrb[0].mxu0
        %v382 = vpop.f32.mrb[0].mxu0
        %v383 = vadd.f32 %v289, %v382
        %v384 = vpop.f32.mrb[0].mxu0
        %385 = vdwg.mxu0
        %386 = vst [vmem:[%s208] sm:$0xff] %v380
        %387 = vst [vmem:[%s208 + $0x8] sm:$0xff] %v383
        %s388 = sand.u32 %s123, 1
        %s389 = scalar_lea.sflag [#allocation8], %s388
        %s390 = sand.u32 %s123, 1
        %s391 = smul.addr %s390, 16
        %s392 = scalar_lea.vmem [#allocation7], %s391
        // Predicated region
        $region33: #{patch_embed_forward.2} parent=31 // pred_check
          %p393 = pneg %p133
        $region34: #{patch_embed_forward.2} parent=31 // pred_check_branch
          %395 = sbr.rel (%p393) target = $region36
        $region35: #{patch_embed_forward.2} parent=31 // pred_region
          %s396 = smul.u32 2, %s27
          %s398 = ssub.s32 256, 256
          %399 = vsyncadd %s389, %s398
          %s400 = sadd.s32 %s28, %s396
          %s401 = smul.addr %s400, 128
          %s402 = scalar_lea.hbm %s4, %s401
          %s403 = sshll.u32 %s392, 4
          %s404 = int_to_ptr.vmem [resolvable:$true] %s403
          %409 = dma.vmem_to_hbm [thread:$0]  %s404, 256, %s402, %s389, 128, 128, 8
        $region36: #{patch_embed_forward.2} parent=31 // pred_fallthru
          _
      $region32: #{patch_embed_forward.2} parent=5 // pred_fallthru
        _
      %p410 = scmp.le.s32.totalorder 2, %s18
      // Predicated region
      $region37: #{patch_embed_forward.2} parent=5 // pred_check
        %p411 = pneg %p410
      $region38: #{patch_embed_forward.2} parent=5 // pred_check_branch
        %413 = sbr.rel (%p411) target = $region40
      $region39: #{patch_embed_forward.2} parent=5 // pred_region
        %s414 = ssub.s32 %s18, 2
        // Predicated region
        $region41: #{patch_embed_forward.2} parent=39 // pred_check
          %p415 = pneg %p139
        $region42: #{patch_embed_forward.2} parent=39 // pred_check_branch
          %417 = sbr.rel (%p415) target = $region44
        $region43: #{patch_embed_forward.2} parent=39 // pred_region
          %s418 = sand.u32 %s124, 1
          %s419 = scalar_lea.sflag [#allocation8], %s418
          %s420 = sand.u32 %s124, 1
          %s421 = smul.addr %s420, 16
          %s422 = scalar_lea.vmem [#allocation7], %s421
          %423 = dma.done %s419, 256
        $region44: #{patch_embed_forward.2} parent=39 // pred_fallthru
          _
      $region40: #{patch_embed_forward.2} parent=5 // pred_fallthru
        _
    $region6: #{patch_embed_forward.2} parent=1 // loop_footer
      %s22 = sadd.s32 1, %s18
    $region7: #{patch_embed_forward.2} parent=1 // loop_footer_branch
      %17 = sbr.rel target = $region3
    $region8: #{patch_embed_forward.2} parent=1 // loop_exit
      _
    %424 = vsyncpa [#allocation8], 1
    %s425 = scalar_lea.sflag [#allocation8], 1
    %426 = vsyncpa %s425, 1

</llo_original>
